<compile_context>
chip_gen: v5e
topology: v5e:2x2
jax: 0.10.0
libtpu: 0.0.40
codegen_flags: <defaults>
</compile_context>

<pallas_src>
import functools

import jax
import jax.numpy as jnp
from jax.experimental import pallas as pl
from jax.experimental.pallas import tpu as pltpu


_FUSED_MAX_B = 4096  # above this, route loss+accuracy through the gridded kernel


# ---------------------------------------------------------------------------
# Kernel 1 (primary few-shot path): fused mean-CE loss + accuracy, one launch.
#   logits_t: (C, B)  — class on sublanes, batch on lanes
#   labels  : (1, B)  — lane-dense int32
# pred is derived in-kernel via argmax (lowest index wins on ties).
# ---------------------------------------------------------------------------
def _fused_loss_acc_kernel(logits_ref, labels_ref, out_ref, *, inv_b):
    logits = logits_ref[...].astype(jnp.float32)        # (C, B) f32 (cast in-kernel)
    labels = labels_ref[...]                            # (1, B) int32
    C = logits.shape[0]

    # numerically-stable log-softmax over the class (sublane) axis
    m = jnp.max(logits, axis=0, keepdims=True)                           # (1, B)
    shifted = logits - m                                                 # (C, B)
    lse = jnp.log(jnp.sum(jnp.exp(shifted), axis=0, keepdims=True))      # (1, B)

    cls = jax.lax.broadcasted_iota(jnp.int32, logits.shape, 0)           # (C, B)
    # gold-class shifted logit via masked select (no one-hot f32 temporary)
    gold = jnp.sum(jnp.where(cls == labels, shifted, 0.0),
                   axis=0, keepdims=True)                                # (1, B)
    # in-kernel argmax, lowest index on ties (matches jnp.argmax / torch)
    pred = jnp.min(jnp.where(logits == m, cls, C), axis=0, keepdims=True)  # (1, B)

    out_ref[0] = jnp.sum(lse - gold) * inv_b                             # loss
    out_ref[1] = jnp.sum((pred == labels).astype(jnp.float32)) * inv_b   # accuracy


def _fused_loss_and_accuracy_small(logits_t, labels_t, b_total):
    kernel = functools.partial(_fused_loss_acc_kernel, inv_b=1.0 / b_total)
    out = pl.pallas_call(
        kernel,
        out_shape=jax.ShapeDtypeStruct((2,), jnp.float32),
        in_specs=[
            pl.BlockSpec(memory_space=pltpu.MemorySpace.VMEM),
            pl.BlockSpec(memory_space=pltpu.MemorySpace.VMEM),
        ],
        out_specs=pl.BlockSpec(memory_space=pltpu.MemorySpace.SMEM),
    )(logits_t, labels_t)
    return out[0], out[1]


# ---------------------------------------------------------------------------
# Kernel 2 (large-B / standalone path): B-gridded mean-CE loss + accuracy.
# Blocks are (C, tile_b) / (1, tile_b); sequential SMEM accumulators; the
# ragged mask runs only on the last grid block.
# ---------------------------------------------------------------------------
def _ce_loss_acc_grid_kernel(logits_ref, labels_ref, out_ref, acc_ref,
                             *, b_total, tile_b):
    i = pl.program_id(0)
    last = pl.num_programs(0) - 1

    @pl.when(i == 0)
    def _init():
        acc_ref[0] = jnp.float32(0.0)
        acc_ref[1] = jnp.float32(0.0)

    logits = logits_ref[...].astype(jnp.float32)        # (C, tile_b)
    labels = labels_ref[...]                            # (1, tile_b)
    C = logits.shape[0]

    m = jnp.max(logits, axis=0, keepdims=True)
    shifted = logits - m
    lse = jnp.log(jnp.sum(jnp.exp(shifted), axis=0, keepdims=True))
    cls = jax.lax.broadcasted_iota(jnp.int32, logits.shape, 0)
    gold = jnp.sum(jnp.where(cls == labels, shifted, 0.0), axis=0, keepdims=True)
    per_ex = lse - gold                                                  # (1, tile_b)
    pred = jnp.min(jnp.where(logits == m, cls, C), axis=0, keepdims=True)
    correct = (pred == labels).astype(jnp.float32)                       # (1, tile_b)

    @pl.when(i < last)
    def _full_block():
        acc_ref[0] += jnp.sum(per_ex)
        acc_ref[1] += jnp.sum(correct)

    @pl.when(i == last)
    def _last_block():
        # ragged lanes past the true batch contain garbage (safe: select only);
        # mask them out, then finalize the means.
        col = jax.lax.broadcasted_iota(jnp.int32, per_ex.shape, 1) + i * tile_b
        valid = col < b_total
        acc_ref[0] += jnp.sum(jnp.where(valid, per_ex, 0.0))
        acc_ref[1] += jnp.sum(jnp.where(valid, correct, 0.0))
        out_ref[0] = acc_ref[0] * jnp.float32(1.0 / b_total)
        out_ref[1] = acc_ref[1] * jnp.float32(1.0 / b_total)


def _loss_and_accuracy_gridded(logits_t, labels_t, b_total, *, tile_b=4096):
    C = logits_t.shape[0]
    tb = min(tile_b, b_total)            # small B -> single full block
    grid_b = -(-b_total // tb)
    kernel = functools.partial(_ce_loss_acc_grid_kernel, b_total=b_total, tile_b=tb)
    out = pl.pallas_call(
        kernel,
        out_shape=jax.ShapeDtypeStruct((2,), jnp.float32),
        grid_spec=pltpu.PrefetchScalarGridSpec(
            num_scalar_prefetch=0,
            grid=(grid_b,),
            in_specs=[
                pl.BlockSpec((C, tb), lambda i: (0, i)),
                pl.BlockSpec((1, tb), lambda i: (0, i)),
            ],
            out_specs=pl.BlockSpec(memory_space=pltpu.MemorySpace.SMEM),
            scratch_shapes=[pltpu.SMEM((2,), jnp.float32)],
        ),
        compiler_params=pltpu.CompilerParams(
            dimension_semantics=("arbitrary",),   # sequential accumulator over B-blocks
        ),
    )(logits_t, labels_t)
    return out[0], out[1]


# ---------------------------------------------------------------------------
# Kernel 3 (standalone accuracy): lane-dense equality-mean, no wrapper padding.
# ---------------------------------------------------------------------------
def _accuracy_kernel(pred_ref, label_ref, out_ref, *, inv_b):
    eq = (pred_ref[...] == label_ref[...]).astype(jnp.float32)   # (1, B)
    out_ref[0] = jnp.sum(eq) * inv_b


def fewshot_accuracy(pred, label):
    """pred, label: any (matching-size) int arrays. Returns scalar accuracy."""
    pred2d = pred.reshape(1, -1).astype(jnp.int32)      # lane-dense (1, B)
    label2d = label.reshape(1, -1).astype(jnp.int32)
    B = pred2d.shape[1]
    kernel = functools.partial(_accuracy_kernel, inv_b=1.0 / B)
    out = pl.pallas_call(
        kernel,
        out_shape=jax.ShapeDtypeStruct((1,), jnp.float32),
        in_specs=[
            pl.BlockSpec(memory_space=pltpu.MemorySpace.VMEM),
            pl.BlockSpec(memory_space=pltpu.MemorySpace.VMEM),
        ],
        out_specs=pl.BlockSpec(memory_space=pltpu.MemorySpace.SMEM),
    )(pred2d, label2d)
    return out[0]


# ---------------------------------------------------------------------------
# Wrappers (lane-dense layout prep + size-guarded routing)
# ---------------------------------------------------------------------------
def _to_lane_dense(logits, label):
    C = logits.shape[-1]
    logits_t = logits.reshape(-1, C).T                  # (C, B), native dtype
    labels_t = label.reshape(1, -1).astype(jnp.int32)   # (1, B)
    return logits_t, labels_t, logits_t.shape[1]


def fewshot_loss_and_accuracy(logits, label):
    """One launch -> (mean CE loss, accuracy of in-kernel argmax(logits))."""
    logits_t, labels_t, B = _to_lane_dense(logits, label)
    if B <= _FUSED_MAX_B:
        return _fused_loss_and_accuracy_small(logits_t, labels_t, B)
    return _loss_and_accuracy_gridded(logits_t, labels_t, B)


def fewshot_loss(logits, label, *, tile_b=4096):
    """logits: (..., C) any float dtype; label: (...) int. Returns scalar mean CE."""
    logits_t, labels_t, B = _to_lane_dense(logits, label)
    loss, _ = _loss_and_accuracy_gridded(logits_t, labels_t, B, tile_b=tile_b)
    return loss


# ---------------------------------------------------------------------------
# Tiny JAX-side container mirroring FewShotREModel's concrete methods
# ---------------------------------------------------------------------------
class FewShotREModelPallas:
    def __init__(self, shots=None):
        self.shots = shots  # CrossEntropyLoss has no parameters; encoders are injected.

    def forward(self, support, query, N, K, Q):
        raise NotImplementedError  # abstract in the reference module

    def loss(self, logits, label):
        return fewshot_loss(logits, label)

    def accuracy(self, pred, label):
        return fewshot_accuracy(pred, label)

    def loss_and_accuracy(self, logits, label):
        # fused single-launch path (pred derived in-kernel as argmax of logits)
        return fewshot_loss_and_accuracy(logits, label)


# ---------------------------------------------------------------------------
# Pure-JAX references for verification
# ---------------------------------------------------------------------------
def _ref_loss(logits, label):
    C = logits.shape[-1]
    lg = logits.reshape(-1, C).astype(jnp.float32)
    lb = label.reshape(-1).astype(jnp.int32)
    logp = jax.nn.log_softmax(lg, axis=-1)
    return -jnp.mean(jnp.take_along_axis(logp, lb[:, None], axis=-1))


def _ref_accuracy(pred, label):
    return jnp.mean((pred.reshape(-1) == label.reshape(-1)).astype(jnp.float32))


if __name__ == "__main__":
    # Few-shot episode: N=5 classes, Q=4 queries per class -> 20 query examples.
    N, K, Q = 5, 1, 4
    B = N * Q

    key = jax.random.PRNGKey(0)
    k1, k2, k3, k4, k5 = jax.random.split(key, 5)
    logits = jax.random.normal(k1, (N, Q, N), dtype=jnp.float32)   # (..., class_num)
    label = jax.random.randint(k2, (N, Q), 0, N, dtype=jnp.int32)
    pred_rand = jax.random.randint(k3, (B,), 0, N, dtype=jnp.int32)

    model = FewShotREModelPallas(shots=K)

    # Fused path (single pallas_call -> both scalars; pred = in-kernel argmax).
    loss_f, acc_f = model.loss_and_accuracy(logits, label)
    loss_f = jax.block_until_ready(loss_f)
    acc_f = jax.block_until_ready(acc_f)

    # Standalone paths.
    loss_val = jax.block_until_ready(model.loss(logits, label))
    acc_val = jax.block_until_ready(model.accuracy(pred_rand, label))

    ref_loss = _ref_loss(logits, label)
    ref_acc_argmax = _ref_accuracy(jnp.argmax(logits, axis=-1), label)
    ref_acc_rand = _ref_accuracy(pred_rand, label)

    assert jnp.allclose(loss_f, ref_loss, atol=1e-5, rtol=1e-5), (loss_f, ref_loss)
    assert jnp.allclose(acc_f, ref_acc_argmax, atol=1e-6), (acc_f, ref_acc_argmax)
    assert jnp.allclose(loss_val, ref_loss, atol=1e-5, rtol=1e-5), (loss_val, ref_loss)
    assert jnp.allclose(acc_val, ref_acc_rand, atol=1e-6), (acc_val, ref_acc_rand)

    # Larger batch with native bf16 logits: exercises the gridded path
    # (B > 4096 -> 3 blocks of tile_b=4096, ragged masked last block),
    # the (C, tile_b) lane-dense layout, and the no-wrapper-upcast path.
    Bl, Cl = 9000, 7
    logits_l = jax.random.normal(k4, (Bl, Cl), dtype=jnp.bfloat16)
    label_l = jax.random.randint(k5, (Bl,), 0, Cl, dtype=jnp.int32)

    loss_l, acc_l = fewshot_loss_and_accuracy(logits_l, label_l)
    loss_l = jax.block_until_ready(loss_l)
    acc_l = jax.block_until_ready(acc_l)
    ref_ll = _ref_loss(logits_l, label_l)
    ref_al = _ref_accuracy(jnp.argmax(logits_l, axis=-1), label_l)
    assert jnp.allclose(loss_l, ref_ll, atol=2e-4, rtol=2e-4), (loss_l, ref_ll)
    assert jnp.allclose(acc_l, ref_al, atol=1e-6), (acc_l, ref_al)

    loss_l2 = jax.block_until_ready(fewshot_loss(logits_l, label_l))
    assert jnp.allclose(loss_l2, ref_ll, atol=2e-4, rtol=2e-4), (loss_l2, ref_ll)

    print("KERNEL_OK")
</pallas_src>

<mosaic_0001>
module attributes {stable_mosaic.version = 11 : i64} {
  func.func @_fused_loss_acc_kernel(%arg0: memref<5x20xf32, #tpu.memory_space<vmem>>, %arg1: memref<1x20xi32, #tpu.memory_space<vmem>>, %arg2: memref<2xf32, #tpu.memory_space<smem>>) attributes {dimension_semantics = [], scalar_prefetch = 0 : i64, scratch_operands = 0 : i64, tpu.core_type = #tpu.core_type<tc>} {
    %c0 = arith.constant 0 : index
    %c0_0 = arith.constant 0 : index
    %0 = vector.load %arg0[%c0, %c0_0] : memref<5x20xf32, #tpu.memory_space<vmem>>, vector<5x20xf32>
    %c0_1 = arith.constant 0 : index
    %c0_2 = arith.constant 0 : index
    %1 = vector.load %arg1[%c0_1, %c0_2] : memref<1x20xi32, #tpu.memory_space<vmem>>, vector<1x20xi32>
    %cst = arith.constant dense<0xFF800000> : vector<20xf32>
    %2 = vector.multi_reduction <maximumf>, %0, %cst [0] : vector<5x20xf32> to vector<20xf32>
    %3 = vector.shape_cast %2 : vector<20xf32> to vector<1x20xf32>
    %4 = vector.broadcast %3 : vector<1x20xf32> to vector<5x20xf32>
    %5 = arith.subf %0, %4 : vector<5x20xf32>
    %6 = math.exp %5 : vector<5x20xf32>
    %cst_3 = arith.constant dense<0.000000e+00> : vector<20xf32>
    %7 = vector.multi_reduction <add>, %6, %cst_3 [0] : vector<5x20xf32> to vector<20xf32>
    %8 = vector.shape_cast %7 : vector<20xf32> to vector<1x20xf32>
    %9 = math.log %8 : vector<1x20xf32>
    %10 = tpu.iota {dimensions = array<i32: 0>} : vector<5x20xi32>
    %11 = vector.broadcast %1 : vector<1x20xi32> to vector<5x20xi32>
    %12 = arith.cmpi eq, %10, %11 : vector<5x20xi32>
    %cst_4 = arith.constant 0.000000e+00 : f32
    %13 = vector.broadcast %cst_4 : f32 to vector<5x20xf32>
    %14 = arith.select %12, %5, %13 : vector<5x20xi1>, vector<5x20xf32>
    %cst_5 = arith.constant dense<0.000000e+00> : vector<20xf32>
    %15 = vector.multi_reduction <add>, %14, %cst_5 [0] : vector<5x20xf32> to vector<20xf32>
    %16 = vector.shape_cast %15 : vector<20xf32> to vector<1x20xf32>
    %17 = vector.broadcast %3 : vector<1x20xf32> to vector<5x20xf32>
    %18 = arith.cmpf oeq, %0, %17 : vector<5x20xf32>
    %c5_i32 = arith.constant 5 : i32
    %19 = vector.broadcast %c5_i32 : i32 to vector<5x20xi32>
    %20 = arith.select %18, %10, %19 : vector<5x20xi1>, vector<5x20xi32>
    %cst_6 = arith.constant dense<2147483647> : vector<20xi32>
    %21 = vector.multi_reduction <minsi>, %20, %cst_6 [0] : vector<5x20xi32> to vector<20xi32>
    %22 = vector.shape_cast %21 : vector<20xi32> to vector<1x20xi32>
    %23 = arith.subf %9, %16 : vector<1x20xf32>
    %24 = vector.shape_cast %23 : vector<1x20xf32> to vector<1x1x20xf32>
    %cst_7 = arith.constant dense<0.000000e+00> : vector<1xf32>
    %25 = vector.multi_reduction <add>, %24, %cst_7 [1, 2] : vector<1x1x20xf32> to vector<1xf32>
    %26 = vector.shape_cast %25 : vector<1xf32> to vector<1x1x1xf32>
    %27 = vector.extract %26[0, 0, 0] : f32 from vector<1x1x1xf32>
    %cst_8 = arith.constant 5.000000e-02 : f32
    %28 = arith.mulf %27, %cst_8 : f32
    %c0_9 = arith.constant 0 : index
    %29 = memref.load %arg2[%c0_9] : memref<2xf32, #tpu.memory_space<smem>>
    memref.store %28, %arg2[%c0_9] : memref<2xf32, #tpu.memory_space<smem>>
    %30 = arith.cmpi eq, %22, %1 : vector<1x20xi32>
    %31 = arith.extui %30 : vector<1x20xi1> to vector<1x20xi32>
    %32 = arith.sitofp %31 : vector<1x20xi32> to vector<1x20xf32>
    %33 = vector.shape_cast %32 : vector<1x20xf32> to vector<1x1x20xf32>
    %cst_10 = arith.constant dense<0.000000e+00> : vector<1xf32>
    %34 = vector.multi_reduction <add>, %33, %cst_10 [1, 2] : vector<1x1x20xf32> to vector<1xf32>
    %35 = vector.shape_cast %34 : vector<1xf32> to vector<1x1x1xf32>
    %36 = vector.extract %35[0, 0, 0] : f32 from vector<1x1x1xf32>
    %cst_11 = arith.constant 5.000000e-02 : f32
    %37 = arith.mulf %36, %cst_11 : f32
    %c1 = arith.constant 1 : index
    %38 = memref.load %arg2[%c1] : memref<2xf32, #tpu.memory_space<smem>>
    memref.store %37, %arg2[%c1] : memref<2xf32, #tpu.memory_space<smem>>
    return
  }
}

</mosaic_0001>

<llo_original>
// kernel: tpu_custom_call.1
$region0: #{tpu_custom_call.1}
  #allocation0 [shape = 'u32[]', space=smem, size = 0x4, offset = 0x4, fixed_abs, tag = 'smem constant byte address 0x4 - core index']
  #allocation1 [shape = 'u32[72,128]{1,0:T(1,128)}', space=vmem, size = 0x9000, scoped, tag = 'internal scratch']
  %s0 = inlined_call_operand.hbm [shape: f32[5,20], index: 0, kind: input, shape index: {}]
  %s1 = inlined_call_operand.hbm [shape: s32[1,20], index: 1, kind: input, shape index: {}]
  %s2 = inlined_call_operand.hbm [shape: f32[2], index: 2, kind: output, shape index: {}]
  %s3 = sld [smem:[#allocation0]]
  $region26: #{tpu_custom_call.1} parent=0
    _
  %s5 = ssub.s32 1, %s3
  %s6 = scalar_select 0, %s5, %s3
  $region1: #{tpu_custom_call.1} parent=0
    #allocation2 [shape = 'u8[4096]{0}', space=vmem, size = 0x1000, scoped, tag = 'input window, operand 0, single buffered']
    #allocation3 [shape = 's32[1]{0}', space=sflag, size = 0x4, scoped, tag = 'scoped memory for tpu_custom_call.1']
    #allocation4 [shape = 's32[1]{0}', space=sflag, size = 0x4, scoped, tag = 'scoped memory for tpu_custom_call.1']
    #allocation5 [shape = 'u8[512]{0}', space=vmem, size = 0x400, scoped, tag = 'input window, operand 1, single buffered']
    #allocation6 [shape = 's32[1]{0}', space=sflag, size = 0x4, scoped, tag = 'scoped memory for tpu_custom_call.1']
    #allocation7 [shape = 'u8[512]{0}', space=smem, size = 0x200, scoped, tag = 'output window, operand 0, single buffered']
    %7 = vsyncpa [#allocation3], 0
    %8 = vsyncpa [#allocation6], 0
    %9 = vsyncpa [#allocation4], 0
    // Predicated region
    $region2: #{tpu_custom_call.1} parent=1 // pred_check
      _
    $region3: #{tpu_custom_call.1} parent=1 // pred_check_branch
      %11 = sbr.rel (0) target = $region5
    $region4: #{tpu_custom_call.1} parent=1 // pred_region
      %13 = vsyncadd [#allocation3], 0
      %s15 = sshll.u32 %s0, 4
      %s16 = int_to_ptr.hbm [resolvable:$true] %s15
      %s17 = sshll.u32 [#allocation2], 4
      %s18 = int_to_ptr.vmem [resolvable:$true] %s17
      %20 = dma.hbm_to_vmem [thread:$0]  %s16, 128, %s18, [#allocation3]
    $region5: #{tpu_custom_call.1} parent=1 // pred_fallthru
      _
    // Predicated region
    $region6: #{tpu_custom_call.1} parent=1 // pred_check
      _
    $region7: #{tpu_custom_call.1} parent=1 // pred_check_branch
      %22 = sbr.rel (0) target = $region9
    $region8: #{tpu_custom_call.1} parent=1 // pred_region
      %24 = vsyncadd [#allocation6], 0
      %s26 = sshll.u32 %s1, 4
      %s27 = int_to_ptr.hbm [resolvable:$true] %s26
      %s28 = sshll.u32 [#allocation5], 4
      %s29 = int_to_ptr.vmem [resolvable:$true] %s28
      %31 = dma.hbm_to_vmem [thread:$0]  %s27, 16, %s29, [#allocation6]
    $region9: #{tpu_custom_call.1} parent=1 // pred_fallthru
      _
    // Predicated region
    $region10: #{tpu_custom_call.1} parent=1 // pred_check
      _
    $region11: #{tpu_custom_call.1} parent=1 // pred_check_branch
      %33 = sbr.rel (0) target = $region13
    $region12: #{tpu_custom_call.1} parent=1 // pred_region
      %35 = dma.done [#allocation3], 128
    $region13: #{tpu_custom_call.1} parent=1 // pred_fallthru
      _
    // Predicated region
    $region14: #{tpu_custom_call.1} parent=1 // pred_check
      _
    $region15: #{tpu_custom_call.1} parent=1 // pred_check_branch
      %37 = sbr.rel (0) target = $region17
    $region16: #{tpu_custom_call.1} parent=1 // pred_region
      %39 = dma.done [#allocation6], 16
    $region17: #{tpu_custom_call.1} parent=1 // pred_fallthru
      _
    %v40 = vld [vmem:[#allocation2] sm:$0x1f]
    %v41 = vld [vmem:[#allocation5] sm:$0x1]
    %vm42 = vcmask 159744
    %v43 = vsel %vm42, %v40, -inf
    %v44 = vrot.slane %v43, 4
    %v45 = vmax.f32 %v43, %v44
    %v46 = vrot.slane %v45, 2
    %v47 = vmax.f32 %v45, %v46
    %v48 = vrot.slane %v47, 1
    %v49 = vmax.f32 %v47, %v48
    %v50 = vsub.f32 %v40, %v49
    %v51 = vmul.f32 %v50, 1.442695
    %v52 = vpow.pop %v51
    %v53 = vsel %vm42, %v52, 0.0
    %v54 = vrot.slane %v53, 4
    %v55 = vadd.f32 %v53, %v54
    %v56 = vrot.slane %v55, 2
    %v57 = vadd.f32 %v55, %v56
    %v58 = vrot.slane %v57, 1
    %v59 = vadd.f32 %v57, %v58
    %v60 = vlog2.pop %v59
    %v61 = vmul.f32 %v60, 0.6931472
    %v62 = vlaneseq
    %v63 = vshrl.u32 %v62, 7
    %v64 = vperm.slane %v41, 0
    %vm65 = vcmp.eq.s32.totalorder %v63, %v64
    %v66 = vsel %vm65, %v50, 0.0
    %v67 = vsel %vm42, %v66, 0.0
    %v68 = vrot.slane %v67, 4
    %v69 = vadd.f32 %v67, %v68
    %v70 = vrot.slane %v69, 2
    %v71 = vadd.f32 %v69, %v70
    %v72 = vrot.slane %v71, 1
    %v73 = vadd.f32 %v71, %v72
    %vm74 = vcmp.eq.f32.partialorder %v40, %v49
    %v75 = vsel %vm74, %v63, 5
    %v76 = vsel %vm42, %v75, 2147483647
    %v77 = vrot.slane %v76, 4
    %vm78 = vcmp.lt.s32.totalorder %v76, %v77
    %v79 = vsel %vm78, %v76, %v77
    %v80 = vrot.slane %v79, 2
    %vm81 = vcmp.lt.s32.totalorder %v79, %v80
    %v82 = vsel %vm81, %v79, %v80
    %v83 = vrot.slane %v82, 1
    %vm84 = vcmp.lt.s32.totalorder %v82, %v83
    %v85 = vsel %vm84, %v82, %v83
    %v86 = vsub.f32 %v61, %v73
    %vm87 = vcmask 155648
    %v88 = vsel %vm87, %v86, 0.0
    %89 = vadd.xlane.f32.xlu0 %v88
    %v90 = vpop.xlane.xlu0 %89
    %v91 = vrot.slane %v90, 4
    %v92 = vadd.f32 %v90, %v91
    %v93 = vrot.slane %v92, 2
    %v94 = vadd.f32 %v92, %v93
    %v95 = vrot.slane %v94, 1
    %v96 = vadd.f32 %v94, %v95
    %s97 = vtos %v96
    %s98 = smul.f32 %s97, 0.05
    %s99 = scalar_lea.smem [#allocation7], 0
    %100 = sst [smem:[%s99]] %s98
    %vm101 = vcmp.eq.s32.totalorder %v85, %v41
    %v102 = vsel %vm101, 1, 0
    %v103 = vcvt.s32.f32 %v102
    %v104 = vsel %vm87, %v103, 0.0
    %105 = vadd.xlane.f32.xlu0 %v104
    %v106 = vpop.xlane.xlu0 %105
    %v107 = vrot.slane %v106, 4
    %v108 = vadd.f32 %v106, %v107
    %v109 = vrot.slane %v108, 2
    %v110 = vadd.f32 %v108, %v109
    %v111 = vrot.slane %v110, 1
    %v112 = vadd.f32 %v110, %v111
    %s113 = vtos %v112
    %s114 = smul.f32 %s113, 0.05
    %s115 = scalar_lea.smem [#allocation7], 1
    %116 = sst [smem:[%s115]] %s114
    // Predicated region
    $region18: #{tpu_custom_call.1} parent=1 // pred_check
      _
    $region19: #{tpu_custom_call.1} parent=1 // pred_check_branch
      %118 = sbr.rel (0) target = $region21
    $region20: #{tpu_custom_call.1} parent=1 // pred_region
      %120 = vsyncadd [#allocation4], 0
      %s122 = sshll.u32 %s2, 4
      %s123 = int_to_ptr.hbm [resolvable:$true] %s122
      %125 = dma.smem_to_hbm [#allocation7], 16, %s123, [#allocation4]
    $region21: #{tpu_custom_call.1} parent=1 // pred_fallthru
      _
    // Predicated region
    $region22: #{tpu_custom_call.1} parent=1 // pred_check
      _
    $region23: #{tpu_custom_call.1} parent=1 // pred_check_branch
      %127 = sbr.rel (0) target = $region25
    $region24: #{tpu_custom_call.1} parent=1 // pred_region
      %129 = dma.done [#allocation4], 16
    $region25: #{tpu_custom_call.1} parent=1 // pred_fallthru
      _
    %130 = sfence
    %131 = vsyncpa [#allocation3], 1
    %132 = vsyncpa [#allocation6], 1
    %133 = vsyncpa [#allocation4], 1

</llo_original>
